<compile_context>
chip_gen: v7x
topology: tpu7x:2x2x1
jax: 0.10.0
libtpu: 0.0.40
codegen_flags: <defaults>
</compile_context>

<pallas_src>
import functools

import jax
import jax.numpy as jnp
from jax.experimental import pallas as pl
from jax.experimental.pallas import tpu as pltpu


def _layernorm_kernel(x_ref, w_ref, b_ref, o_ref, *, eps: float, d_true: int,
                      needs_mask: bool):
    # x_ref: (TILE_ROWS, d_pad) block in VMEM; w_ref/b_ref: (1, d_pad) float32.
    x = x_ref[...].astype(jnp.float32)
    inv_d = 1.0 / d_true

    # Wrapper zero-pads lanes beyond d_true, so sum(x) already excludes padding.
    mean = jnp.sum(x, axis=-1, keepdims=True) * inv_d
    centered = x - mean
    sq = centered * centered
    if needs_mask:
        lane = jax.lax.broadcasted_iota(jnp.int32, sq.shape, dimension=1)
        sq = jnp.where(lane < d_true, sq, 0.0)  # padded lanes contribute 0 to var
    var = jnp.sum(sq, axis=-1, keepdims=True) * inv_d  # biased (unbiased=False)
    inv_std = jax.lax.rsqrt(var + eps)

    # w/b arrive already in float32; (1, d_pad) broadcasts over rows.
    o_ref[...] = (centered * inv_std * w_ref[...] + b_ref[...]).astype(o_ref.dtype)


def layernorm(residual: jax.Array, w: jax.Array, b: jax.Array,
              eps: float = 1e-5, tile_rows: int | None = None,
              vmem_budget_bytes: int = 40 << 20) -> jax.Array:
    """LayerNorm over the last dim of residual [batch, posn, d_model]."""
    batch, posn, d_model = residual.shape
    rows = batch * posn
    itemsize = jnp.dtype(residual.dtype).itemsize
    sublane = {4: 8, 2: 16, 1: 32}.get(itemsize, 8)

    # Lane-dense last dim (multiple of 128); mask stats if we had to pad.
    d_pad = pl.cdiv(d_model, 128) * 128
    needs_mask = d_pad != d_model

    # Auto-size tile_rows: big enough that the ~0.35us/step grid overhead is
    # negligible, small enough that double-buffered IO + f32 working set stays
    # within the v7x-safe VMEM budget.
    if tile_rows is None:
        per_row_bytes = 4 * d_pad * itemsize + 3 * d_pad * 4
        tile_rows = min(1024, max(sublane, vmem_budget_bytes // per_row_bytes))
    tile_rows = max(sublane, (tile_rows // sublane) * sublane)
    rows_aligned = pl.cdiv(rows, sublane) * sublane
    tile_rows = min(tile_rows, rows_aligned)

    # Pad row count up to a multiple of tile_rows (padded rows are zeros:
    # var=0 -> rsqrt(eps), finite, and sliced off afterwards).
    rows_pad = pl.cdiv(rows, tile_rows) * tile_rows

    x2d = residual.reshape(rows, d_model)
    if rows_pad != rows or needs_mask:
        x2d = jnp.pad(x2d, ((0, rows_pad - rows), (0, d_pad - d_model)))

    # Cast params to f32 once here (not per grid step inside the kernel).
    w2d = w.reshape(1, d_model).astype(jnp.float32)
    b2d = b.reshape(1, d_model).astype(jnp.float32)
    if needs_mask:
        w2d = jnp.pad(w2d, ((0, 0), (0, d_pad - d_model)))
        b2d = jnp.pad(b2d, ((0, 0), (0, d_pad - d_model)))

    grid = (rows_pad // tile_rows,)

    # VMEM budget: double-buffered in+out tiles + f32 working set + params,
    # with headroom; clamped to stay within v7x's 64 MiB physical VMEM.
    vmem_needed = (4 * tile_rows * d_pad * itemsize      # 2x in + 2x out buffers
                   + 3 * tile_rows * d_pad * 4           # f32 upcast working set
                   + 2 * d_pad * 4)                      # w, b
    vmem_limit = int(min(max(int(vmem_needed * 1.5), 32 << 20), 56 << 20))

    out2d = pl.pallas_call(
        functools.partial(_layernorm_kernel, eps=eps, d_true=d_model,
                          needs_mask=needs_mask),
        out_shape=jax.ShapeDtypeStruct((rows_pad, d_pad), residual.dtype),
        grid_spec=pltpu.PrefetchScalarGridSpec(
            num_scalar_prefetch=0,
            grid=grid,
            in_specs=[
                pl.BlockSpec((tile_rows, d_pad), lambda i: (i, 0)),
                pl.BlockSpec((1, d_pad), lambda i: (0, 0)),
                pl.BlockSpec((1, d_pad), lambda i: (0, 0)),
            ],
            out_specs=pl.BlockSpec((tile_rows, d_pad), lambda i: (i, 0)),
        ),
        compiler_params=pltpu.CompilerParams(
            dimension_semantics=("parallel",),   # row grid shards across v7x's 2 TCs
            vmem_limit_bytes=vmem_limit,
        ),
    )(x2d, w2d, b2d)

    if rows_pad != rows or needs_mask:
        out2d = out2d[:rows, :d_model]
    return out2d.reshape(batch, posn, d_model)


def layernorm_ref(residual, w, b, eps=1e-5):
    x = residual.astype(jnp.float32)
    mean = jnp.mean(x, axis=-1, keepdims=True)
    var = jnp.mean((x - mean) ** 2, axis=-1, keepdims=True)
    return (((x - mean) / jnp.sqrt(var + eps)) * w + b).astype(residual.dtype)


if __name__ == "__main__":
    eps = 1e-5
    key = jax.random.PRNGKey(0)

    # Test 1: small Config-consistent shapes (batch=2, posn=8, d_model=128).
    k1, k2, k3 = jax.random.split(key, 3)
    residual = jax.random.normal(k1, (2, 8, 128), dtype=jnp.float32)
    w = jnp.ones((128,), dtype=jnp.float32)   # nn.Parameter(ones)
    b = jnp.zeros((128,), dtype=jnp.float32)  # nn.Parameter(zeros)
    out = jax.block_until_ready(layernorm(residual, w, b, eps=eps))
    ref = layernorm_ref(residual, w, b, eps=eps)
    assert out.shape == (2, 8, 128)
    assert jnp.allclose(out, ref, atol=1e-5, rtol=1e-5), "mismatch vs reference (test 1)"

    # Test 2: full Config d_model=768, row count not a multiple of the tile
    # (exercises pl.cdiv grid + row padding), non-trivial w/b.
    residual2 = jax.random.normal(k2, (3, 5, 768), dtype=jnp.float32)
    w2 = 1.0 + 0.01 * jax.random.normal(k3, (768,), dtype=jnp.float32)
    b2 = 0.1 * jnp.arange(768, dtype=jnp.float32) / 768.0
    out2 = jax.block_until_ready(layernorm(residual2, w2, b2, eps=eps))
    ref2 = layernorm_ref(residual2, w2, b2, eps=eps)
    assert out2.shape == (3, 5, 768)
    assert jnp.allclose(out2, ref2, atol=1e-5, rtol=1e-5), "mismatch vs reference (test 2)"

    print("KERNEL_OK")
</pallas_src>

<mosaic_0001>
module attributes {stable_mosaic.version = 11 : i64} {
  func.func @_layernorm_kernel(%arg0: i32, %arg1: memref<16x128xf32, #tpu.memory_space<vmem>>, %arg2: memref<1x128xf32, #tpu.memory_space<vmem>>, %arg3: memref<1x128xf32, #tpu.memory_space<vmem>>, %arg4: memref<16x128xf32, #tpu.memory_space<vmem>>) attributes {dimension_semantics = [#tpu.dimension_semantics<parallel>], iteration_bounds = array<i64: 1>, scalar_prefetch = 0 : i64, scratch_operands = 0 : i64, tpu.core_type = #tpu.core_type<tc>, window_params = [{transform_indices = @transform_0, window_bounds = array<i64: 16, 128>}, {pipeline_mode = #tpu.pipeline_mode<synchronous>, transform_indices = @transform_1, window_bounds = array<i64: 1, 128>}, {pipeline_mode = #tpu.pipeline_mode<synchronous>, transform_indices = @transform_2, window_bounds = array<i64: 1, 128>}, {transform_indices = @transform_3, window_bounds = array<i64: 16, 128>}]} {
    %c0 = arith.constant 0 : index
    %c0_0 = arith.constant 0 : index
    %0 = vector.load %arg1[%c0, %c0_0] : memref<16x128xf32, #tpu.memory_space<vmem>>, vector<16x128xf32>
    %cst = arith.constant dense<0.000000e+00> : vector<16xf32>
    %1 = vector.multi_reduction <add>, %0, %cst [1] : vector<16x128xf32> to vector<16xf32>
    %2 = vector.shape_cast %1 : vector<16xf32> to vector<16x1xf32>
    %cst_1 = arith.constant 7.812500e-03 : f32
    %3 = vector.broadcast %cst_1 : f32 to vector<16x1xf32>
    %4 = arith.mulf %2, %3 : vector<16x1xf32>
    %5 = vector.broadcast %4 : vector<16x1xf32> to vector<16x128xf32>
    %6 = arith.subf %0, %5 : vector<16x128xf32>
    %7 = arith.mulf %6, %6 : vector<16x128xf32>
    %cst_2 = arith.constant dense<0.000000e+00> : vector<16xf32>
    %8 = vector.multi_reduction <add>, %7, %cst_2 [1] : vector<16x128xf32> to vector<16xf32>
    %9 = vector.shape_cast %8 : vector<16xf32> to vector<16x1xf32>
    %cst_3 = arith.constant 7.812500e-03 : f32
    %10 = vector.broadcast %cst_3 : f32 to vector<16x1xf32>
    %11 = arith.mulf %9, %10 : vector<16x1xf32>
    %cst_4 = arith.constant 9.99999974E-6 : f32
    %12 = vector.broadcast %cst_4 : f32 to vector<16x1xf32>
    %13 = arith.addf %11, %12 : vector<16x1xf32>
    %14 = math.rsqrt %13 : vector<16x1xf32>
    %15 = vector.broadcast %14 : vector<16x1xf32> to vector<16x128xf32>
    %16 = arith.mulf %6, %15 : vector<16x128xf32>
    %c0_5 = arith.constant 0 : index
    %c0_6 = arith.constant 0 : index
    %17 = vector.load %arg2[%c0_5, %c0_6] : memref<1x128xf32, #tpu.memory_space<vmem>>, vector<1x128xf32>
    %18 = vector.broadcast %17 : vector<1x128xf32> to vector<16x128xf32>
    %19 = arith.mulf %16, %18 : vector<16x128xf32>
    %c0_7 = arith.constant 0 : index
    %c0_8 = arith.constant 0 : index
    %20 = vector.load %arg3[%c0_7, %c0_8] : memref<1x128xf32, #tpu.memory_space<vmem>>, vector<1x128xf32>
    %21 = vector.broadcast %20 : vector<1x128xf32> to vector<16x128xf32>
    %22 = arith.addf %19, %21 : vector<16x128xf32>
    %c0_9 = arith.constant 0 : index
    %c0_10 = arith.constant 0 : index
    %23 = vector.load %arg4[%c0_9, %c0_10] : memref<16x128xf32, #tpu.memory_space<vmem>>, vector<16x128xf32>
    tpu.vector_store %arg4[%c0_9, %c0_10], %22 {strides = array<i32>} : memref<16x128xf32, #tpu.memory_space<vmem>>, vector<16x128xf32>,
    return
  }
  func.func @transform_0(%arg0: i32) -> (i32, i32) {
    %c0_i32 = arith.constant 0 : i32
    %c0_i32_0 = arith.constant 0 : i32
    return %arg0, %c0_i32 : i32, i32
  }
  func.func @transform_1(%arg0: i32) -> (i32, i32) {
    %c0_i32 = arith.constant 0 : i32
    %c0_i32_0 = arith.constant 0 : i32
    %c0_i32_1 = arith.constant 0 : i32
    return %c0_i32, %c0_i32_0 : i32, i32
  }
  func.func @transform_2(%arg0: i32) -> (i32, i32) {
    %c0_i32 = arith.constant 0 : i32
    %c0_i32_0 = arith.constant 0 : i32
    %c0_i32_1 = arith.constant 0 : i32
    return %c0_i32, %c0_i32_0 : i32, i32
  }
  func.func @transform_3(%arg0: i32) -> (i32, i32) {
    %c0_i32 = arith.constant 0 : i32
    %c0_i32_0 = arith.constant 0 : i32
    return %arg0, %c0_i32 : i32, i32
  }
}

</mosaic_0001>

<llo_original>
// kernel: tpu_custom_call.1
$region0: #{tpu_custom_call.1}
  #allocation0 [shape = 'u32[]', space=smem, size = 0x4, offset = 0x4, fixed_abs, tag = 'smem constant byte address 0x4 - core index']
  #allocation1 [shape = 'u32[144,128]{1,0:T(1,128)}', space=vmem, size = 0x12000, scoped, tag = 'internal scratch']
  %s0 = inlined_call_operand.hbm [shape: f32[16,128], index: 0, kind: input, shape index: {}]
  %s1 = inlined_call_operand.vmem [shape: f32[1,128], index: 1, kind: input, shape index: {}]
  %s2 = inlined_call_operand.vmem [shape: f32[1,128], index: 2, kind: input, shape index: {}]
  %s3 = inlined_call_operand.hbm [shape: f32[16,128], index: 3, kind: output, shape index: {}]
  %s4 = sld [smem:[#allocation0]]
  $region26: #{tpu_custom_call.1} parent=0
    _
  %s6 = ssub.s32 1, %s4
  %s7 = scalar_select 0, %s6, %s4
  $region1: #{tpu_custom_call.1} parent=0
    #allocation2 [shape = 'u8[8192]{0}', space=vmem, size = 0x2000, scoped, tag = 'input window, operand 0, single buffered']
    #allocation3 [shape = 's32[1]{0}', space=sflag, size = 0x4, scoped, tag = 'scoped memory for tpu_custom_call.1']
    #allocation4 [shape = 's32[1]{0}', space=sflag, size = 0x4, scoped, tag = 'scoped memory for tpu_custom_call.1']
    #allocation5 [shape = 'u8[8192]{0}', space=vmem, size = 0x2000, scoped, tag = 'output window, operand 0, single buffered']
    %8 = vsyncpa [#allocation3], 0
    %9 = vsyncpa [#allocation4], 0
    // Predicated region
    $region2: #{tpu_custom_call.1} parent=1 // pred_check
      _
    $region3: #{tpu_custom_call.1} parent=1 // pred_check_branch
      %11 = sbr.rel (0) target = $region5
    $region4: #{tpu_custom_call.1} parent=1 // pred_region
      %s13 = ssub.s32 256, 256
      %14 = vsyncadd [#allocation3], %s13
      %s15 = sshll.u32 [#allocation2], 4
      %s16 = int_to_ptr.vmem [resolvable:$true] %s15
      %21 = dma.hbm_to_vmem [thread:$0]  %s0, 256, %s16, [#allocation3], 128, 128, 8
    $region5: #{tpu_custom_call.1} parent=1 // pred_fallthru
      _
    // Predicated region
    $region6: #{tpu_custom_call.1} parent=1 // pred_check
      _
    $region7: #{tpu_custom_call.1} parent=1 // pred_check_branch
      %23 = sbr.rel (0) target = $region9
    $region8: #{tpu_custom_call.1} parent=1 // pred_region
      _
    $region9: #{tpu_custom_call.1} parent=1 // pred_fallthru
      _
    // Predicated region
    $region10: #{tpu_custom_call.1} parent=1 // pred_check
      _
    $region11: #{tpu_custom_call.1} parent=1 // pred_check_branch
      %25 = sbr.rel (0) target = $region13
    $region12: #{tpu_custom_call.1} parent=1 // pred_region
      _
    $region13: #{tpu_custom_call.1} parent=1 // pred_fallthru
      _
    // Predicated region
    $region14: #{tpu_custom_call.1} parent=1 // pred_check
      _
    $region15: #{tpu_custom_call.1} parent=1 // pred_check_branch
      %27 = sbr.rel (0) target = $region17
    $region16: #{tpu_custom_call.1} parent=1 // pred_region
      %28 = dma.done [#allocation3], 256
    $region17: #{tpu_custom_call.1} parent=1 // pred_fallthru
      _
    %v29 = vld [vmem:[#allocation2] sm:$0xff]
    %v30 = vld [vmem:[#allocation2 + $0x8] sm:$0xff]
    %31 = vadd.xlane.f32.xlu0 %v29
    %v32 = vpop.xlane.xlu0 %31
    %33 = vadd.xlane.f32.xlu0 %v30
    %v34 = vpop.xlane.xlu0 %33
    %v35 = vmul.f32 %v32, 0.0078125
    %v36 = vmul.f32 %v34, 0.0078125
    %v37 = vsub.f32 %v29, %v35
    %v38 = vsub.f32 %v30, %v36
    %v39 = vmul.f32 %v37, %v37
    %v40 = vmul.f32 %v38, %v38
    %41 = vadd.xlane.f32.xlu0 %v39
    %v42 = vpop.xlane.xlu0 %41
    %43 = vadd.xlane.f32.xlu0 %v40
    %v44 = vpop.xlane.xlu0 %43
    %v45 = vmul.f32 %v42, 0.0078125
    %v46 = vmul.f32 %v44, 0.0078125
    %v47 = vadd.f32 %v45, 1e-05
    %v48 = vadd.f32 %v46, 1e-05
    %v49 = vrsqrt.pop %v47
    %v50 = vrsqrt.pop %v48
    %v51 = vmul.f32 %v37, %v49
    %v52 = vmul.f32 %v38, %v50
    %v53 = vld [vmem:[%s1] sm:$0x1]
    %v55 = vlaneseq
    %v56 = vshrl.u32 %v55, 7
    %v57 = vsub.s32 0, %v56
    %v58 = vrot.slane %v53, %v57
    %v60 = vmul.f32 %v51, %v58
    %v61 = vmul.f32 %v52, %v58
    %v62 = vld [vmem:[%s2] sm:$0x1]
    %v64 = vlaneseq
    %v65 = vshrl.u32 %v64, 7
    %v66 = vsub.s32 0, %v65
    %v67 = vrot.slane %v62, %v66
    %v69 = vadd.f32 %v60, %v67
    %v70 = vadd.f32 %v61, %v67
    %71 = vst [vmem:[#allocation5] sm:$0xff] %v69
    %72 = vst [vmem:[#allocation5 + $0x8] sm:$0xff] %v70
    // Predicated region
    $region18: #{tpu_custom_call.1} parent=1 // pred_check
      _
    $region19: #{tpu_custom_call.1} parent=1 // pred_check_branch
      %74 = sbr.rel (0) target = $region21
    $region20: #{tpu_custom_call.1} parent=1 // pred_region
      %s76 = ssub.s32 256, 256
      %77 = vsyncadd [#allocation4], %s76
      %s78 = sshll.u32 [#allocation5], 4
      %s79 = int_to_ptr.vmem [resolvable:$true] %s78
      %84 = dma.vmem_to_hbm [thread:$0]  %s79, 256, %s3, [#allocation4], 128, 128, 8
    $region21: #{tpu_custom_call.1} parent=1 // pred_fallthru
      _
    // Predicated region
    $region22: #{tpu_custom_call.1} parent=1 // pred_check
      _
    $region23: #{tpu_custom_call.1} parent=1 // pred_check_branch
      %86 = sbr.rel (0) target = $region25
    $region24: #{tpu_custom_call.1} parent=1 // pred_region
      %87 = dma.done [#allocation4], 256
    $region25: #{tpu_custom_call.1} parent=1 // pred_fallthru
      _
    %88 = vsyncpa [#allocation3], 1
    %89 = vsyncpa [#allocation4], 1

</llo_original>
